<compile_context>
chip_gen: v7x
topology: tpu7x:2x2x1
jax: 0.10.0
libtpu: 0.0.40
codegen_flags: <defaults>
</compile_context>

<pallas_src>
import functools

import jax
import jax.numpy as jnp
from jax import lax
from jax.experimental import pallas as pl
from jax.experimental.pallas import tpu as pltpu

_NEG_INF = -1e30     # additive mask value for non-edges (f32)
_M_INIT = -1e9       # finite running-max init: exp(_NEG_INF - _M_INIT) == 0 exactly
_VMEM_LIMIT = 32 * 1024 * 1024   # safe scoped-VMEM cap on v5e / v6e / v7x


def _ceil_to(a, b):
    return -(-a // b) * b


# ----------------------------------------------------------------------------
# Kernel 1: fused projection (all heads) + source / destination logits
# ----------------------------------------------------------------------------
def _proj_kernel(x_ref, w_ref, asrc_ref, adstT_ref, xp_ref, asrc_o_ref, adst_o_ref):
    """x_ref:      [Tn, Fp]  bf16  node features, ones column at feature index fin
       w_ref:      [Fp, Cp]  bf16  packed weights (head h at lanes h*C..(h+1)*C,
                                   ones feature routed to lane Cp-1)
       asrc_ref:   [H, Cp]   bf16  att_src rows, packed like W columns
       adstT_ref:  [Cp, H]   bf16  att_dst columns, packed like W columns
       xp_ref:     [Tn, Cp]  bf16  out: packed projected features (lane Cp-1 == 1.0)
       asrc_o_ref: [H, Tn]   f32   out: a_src logits, lane-major per head
       adst_o_ref: [Tn, H]   f32   out: a_dst logits, one column per head
    """
    y = jnp.dot(x_ref[...], w_ref[...], preferred_element_type=jnp.float32)
    yb = y.astype(jnp.bfloat16)
    xp_ref[...] = yb
    # a_src[h, j] = <xp[j], att_src_packed[h]>; contraction on the last dims so
    # the result is already lane-major [H, Tn] (no transposes downstream).
    asrc_o_ref[...] = lax.dot_general(
        asrc_ref[...], yb, dimension_numbers=(((1,), (1,)), ((), ())),
        preferred_element_type=jnp.float32)
    # a_dst[j, h]: one column per head, ready for sublane broadcast in kernel 2.
    adst_o_ref[...] = jnp.dot(yb, adstT_ref[...], preferred_element_type=jnp.float32)


# ----------------------------------------------------------------------------
# Kernel 2: tiled attention + aggregation (online softmax over src tiles)
# ----------------------------------------------------------------------------
def _attn_kernel(cnt_ref, asrc_ref, adst_ref, xps_ref, adj_ref, bias_ref, mix_ref,
                 out_ref, m_sc, acc_sc, *, heads, hc, cp, concat, apply_elu):
    """cnt_ref:  [n_i, n_k] int32 SMEM  edges per (dst, src) tile (scalar prefetch)
       asrc_ref: [H, Tk]   f32   a_src of the src rows (lane-major)
       adst_ref: [Tm, H]   f32   a_dst of the dst rows (column per head)
       xps_ref:  [Tk, Cp]  bf16  packed projected src features (lane Cp-1 == 1.0)
       adj_ref:  [Tm, Tk]  int8  1 => NO edge src -> dst, 0 => edge (self loops added)
       bias_ref: [1, Cp]   f32   packed bias
       mix_ref:  [Cp, Cp]  f32   head-mean mixing matrix (used only when concat=False)
       out_ref:  [Tm, Cp]  f32   packed output block (resident over the src axis)
       scratch:  m_sc [H, Tm, 1] f32 running max; acc_sc [H, Tm, Cp] f32 running
                 numerator (lane Cp-1 carries the softmax denominator).
    """
    i = pl.program_id(0)
    k = pl.program_id(1)
    nk = pl.num_programs(1)

    @pl.when(k == 0)
    def _init():
        m_sc[...] = jnp.full(m_sc.shape, _M_INIT, jnp.float32)
        acc_sc[...] = jnp.zeros(acc_sc.shape, jnp.float32)

    @pl.when(cnt_ref[i, k] > 0)          # skip tiles with no edges entirely
    def _body():
        # {0, -1e30} additive mask, built once per step (hoisted out of head loop).
        bias_mask = adj_ref[...].astype(jnp.float32) * _NEG_INF       # [Tm, Tk]
        adst = adst_ref[...]                                          # [Tm, H]
        asrc = asrc_ref[...]                                          # [H, Tk]
        xps = xps_ref[...]                                            # [Tk, Cp]
        for h in range(heads):                                        # small & static
            e = adst[:, h:h + 1] + asrc[h:h + 1, :]                   # [Tm, Tk]
            e = jnp.maximum(e, 0.2 * e)                               # LeakyReLU(0.2)
            e = e + bias_mask
            m_prev = m_sc[h]                                          # [Tm, 1]
            m_new = jnp.maximum(m_prev, jnp.max(e, axis=-1, keepdims=True))
            p = jnp.exp(e - m_new)        # masked entries underflow to exactly 0
            # ones lane of xps accumulates sum_j p into acc lane Cp-1 (no XLU sum).
            acc_sc[h] = jnp.exp(m_prev - m_new) * acc_sc[h] + jnp.dot(
                p.astype(jnp.bfloat16), xps, preferred_element_type=jnp.float32)
            m_sc[h] = m_new

    @pl.when(k == nk - 1)
    def _finalize():
        lane = lax.broadcasted_iota(jnp.int32, (1, cp), 1)
        out_acc = jnp.zeros(acc_sc.shape[1:], jnp.float32)            # [Tm, Cp]
        for h in range(heads):
            a = acc_sc[h]                                             # [Tm, Cp]
            l_h = a[:, cp - 1:cp]                                     # denominator lane
            inv = pl.reciprocal(l_h + 1e-16, approx=True)
            head_mask = jnp.where((lane >= h * hc) & (lane < (h + 1) * hc), 1.0, 0.0)
            out_acc = out_acc + a * inv * head_mask
        if concat:
            o = out_acc + bias_ref[...]
        else:
            # mean over heads: map lanes h*hc+c -> c with weight 1/heads (tiny
            # finalize-only f32 matmul on the otherwise idle MXU).
            o = jnp.dot(out_acc, mix_ref[...], preferred_element_type=jnp.float32)
            o = o + bias_ref[...]
        if apply_elu:
            o = jnp.where(o > 0, o, jnp.exp(o) - 1.0)
        out_ref[...] = o.astype(out_ref.dtype)


# ----------------------------------------------------------------------------
# Wrapper: packing, BlockSpecs, grids
# ----------------------------------------------------------------------------
def _pick_tiles(n):
    # src (reduction) tiles as large as reasonable (amortise ~0.35us/step pipeline
    # overhead, cut xp re-streaming); dst tiles shrunk, if possible, so the
    # "parallel" dst axis keeps >= 4 blocks for megacore sharding on v7x.
    if n <= 128:
        base = 128
    elif n <= 1024:
        base = 256
    else:
        base = 512
    n_pad = _ceil_to(n, base)
    tile_k = base
    tile_m = base
    while tile_m > 128 and n_pad // tile_m < 4:
        tile_m //= 2
    return tile_m, tile_k, n_pad


def gat_conv(x, nonedge_i8, counts, w, att_src, att_dst, bias, *, heads, out_ch,
             concat, apply_elu, tile_m, tile_k):
    """One GATConv layer (torch_geometric semantics, eval mode) on TPU.

    x:          [N, F_in] f32 node features (unpadded).
    nonedge_i8: [N_pad, N_pad] int8, 1 => no edge src->dst (self loops added).
    counts:     [N_pad/tile_m, N_pad/tile_k] int32 edges per tile (scalar prefetch).
    w: [F_in, heads*out_ch], att_src/att_dst: [heads, out_ch],
    bias: [heads*out_ch] (concat) or [out_ch] (mean).
    Returns [N, heads*out_ch] (concat) or [N, out_ch], f32.
    """
    n, fin = x.shape
    n_pad = nonedge_i8.shape[0]
    hc = out_ch
    cp = _ceil_to(heads * hc + 1, 128)       # +1 reserves the ones/denominator lane
    fin_p = _ceil_to(fin + 1, 128)           # +1 reserves the ones input feature

    # ---- pack operands -------------------------------------------------------
    x_p = (jnp.zeros((n_pad, fin_p), jnp.float32)
           .at[:n, :fin].set(x).at[:, fin].set(1.0)).astype(jnp.bfloat16)
    w_p = (jnp.zeros((fin_p, cp), jnp.float32)
           .at[:fin, :heads * hc].set(w).at[fin, cp - 1].set(1.0)).astype(jnp.bfloat16)
    asrc_p = jnp.zeros((heads, cp), jnp.float32)
    adstT_p = jnp.zeros((cp, heads), jnp.float32)
    for h in range(heads):
        asrc_p = asrc_p.at[h, h * hc:(h + 1) * hc].set(att_src[h])
        adstT_p = adstT_p.at[h * hc:(h + 1) * hc, h].set(att_dst[h])
    asrc_p = asrc_p.astype(jnp.bfloat16)
    adstT_p = adstT_p.astype(jnp.bfloat16)
    if concat:
        bias_p = jnp.zeros((1, cp), jnp.float32).at[0, :heads * hc].set(bias)
        mix = jnp.zeros((cp, cp), jnp.float32)                 # unused in concat mode
    else:
        bias_p = jnp.zeros((1, cp), jnp.float32).at[0, :hc].set(bias)
        r = jnp.arange(cp)[:, None]
        c = jnp.arange(cp)[None, :]
        mix = jnp.where((c == r % hc) & (r < heads * hc), 1.0 / heads, 0.0)

    n_i = n_pad // tile_m
    n_k = n_pad // tile_k

    # ---- kernel 1: fused projection + a_src / a_dst --------------------------
    xp, a_src, a_dst = pl.pallas_call(
        _proj_kernel,
        grid_spec=pltpu.PrefetchScalarGridSpec(
            num_scalar_prefetch=0,
            grid=(n_i,),
            in_specs=[
                pl.BlockSpec((tile_m, fin_p), lambda i: (i, 0)),
                pl.BlockSpec((fin_p, cp), lambda i: (0, 0)),
                pl.BlockSpec((heads, cp), lambda i: (0, 0)),
                pl.BlockSpec((cp, heads), lambda i: (0, 0)),
            ],
            out_specs=[
                pl.BlockSpec((tile_m, cp), lambda i: (i, 0)),
                pl.BlockSpec((heads, tile_m), lambda i: (0, i)),
                pl.BlockSpec((tile_m, heads), lambda i: (i, 0)),
            ]),
        out_shape=(
            jax.ShapeDtypeStruct((n_pad, cp), jnp.bfloat16),
            jax.ShapeDtypeStruct((heads, n_pad), jnp.float32),
            jax.ShapeDtypeStruct((n_pad, heads), jnp.float32),
        ),
        compiler_params=pltpu.CompilerParams(
            dimension_semantics=("parallel",),
            vmem_limit_bytes=_VMEM_LIMIT),
    )(x_p, w_p, asrc_p, adstT_p)

    # ---- kernel 2: tiled attention + aggregation -----------------------------
    cost = pl.CostEstimate(
        flops=int(2 * heads * n_pad * n_pad * cp),
        transcendentals=int(heads * n_pad * n_pad),
        bytes_accessed=int(n_pad * n_pad                      # int8 non-edge mask
                           + n_i * n_pad * cp * 2             # xp re-streamed per dst row
                           + n_pad * cp * 4                   # output
                           + n_i * heads * n_pad * 8))        # a_src / a_dst

    out = pl.pallas_call(
        functools.partial(_attn_kernel, heads=heads, hc=hc, cp=cp,
                          concat=concat, apply_elu=apply_elu),
        grid_spec=pltpu.PrefetchScalarGridSpec(
            num_scalar_prefetch=1,                               # counts -> SMEM
            grid=(n_i, n_k),
            in_specs=[
                pl.BlockSpec((heads, tile_k), lambda i, k, cnt: (0, k)),   # a_src (src)
                pl.BlockSpec((tile_m, heads), lambda i, k, cnt: (i, 0)),   # a_dst (dst)
                pl.BlockSpec((tile_k, cp), lambda i, k, cnt: (k, 0)),      # xp (src)
                pl.BlockSpec((tile_m, tile_k), lambda i, k, cnt: (i, k)),  # non-edge i8
                pl.BlockSpec((1, cp), lambda i, k, cnt: (0, 0)),           # bias
                pl.BlockSpec((cp, cp), lambda i, k, cnt: (0, 0)),          # head mix
            ],
            out_specs=pl.BlockSpec((tile_m, cp), lambda i, k, cnt: (i, 0)),
            scratch_shapes=[
                pltpu.VMEM((heads, tile_m, 1), jnp.float32),    # running max
                pltpu.VMEM((heads, tile_m, cp), jnp.float32),   # running acc (+denom lane)
            ]),
        out_shape=jax.ShapeDtypeStruct((n_pad, cp), jnp.float32),
        compiler_params=pltpu.CompilerParams(
            dimension_semantics=("parallel", "arbitrary"),
            vmem_limit_bytes=_VMEM_LIMIT),
        cost_estimate=cost,
    )(counts, a_src, a_dst, xp, nonedge_i8, bias_p, mix)

    if concat:
        return out[:n, :heads * hc]          # already [N, heads*out_ch] packed order
    return out[:n, :hc]


# ----------------------------------------------------------------------------
# Glue: adjacency / counts, params, full GAT forward
# ----------------------------------------------------------------------------
def build_graph_inputs(edge_index, n_pad, tile_m, tile_k):
    """int8 non-edge indicator (1 => no edge) with self loops + per-tile edge counts."""
    src, dst = edge_index[0], edge_index[1]
    edge = jnp.zeros((n_pad, n_pad), jnp.int32)
    edge = edge.at[dst, src].set(1)                               # message flows src -> dst
    edge = jnp.maximum(edge, jnp.eye(n_pad, dtype=jnp.int32))     # self loops (padded too)
    counts = edge.reshape(n_pad // tile_m, tile_m,
                          n_pad // tile_k, tile_k).sum((1, 3)).astype(jnp.int32)
    nonedge = (1 - edge).astype(jnp.int8)
    return nonedge, counts


def glorot(key, shape):
    fan_in, fan_out = shape[0], shape[-1]
    lim = (6.0 / (fan_in + fan_out)) ** 0.5
    return jax.random.uniform(key, shape, jnp.float32, -lim, lim)


def init_gat_params(key, in_channels, out_channels, hp):
    h1, c1 = hp['heads'], hp['hidden_channels1']
    h2, c2 = out_channels, out_channels * 2
    ks = jax.random.split(key, 6)
    return dict(
        w1=glorot(ks[0], (in_channels, h1 * c1)),
        att_src1=glorot(ks[1], (h1, c1)),
        att_dst1=glorot(ks[2], (h1, c1)),
        b1=jnp.zeros((h1 * c1,), jnp.float32),
        w2=glorot(ks[3], (h1 * c1, h2 * c2)),
        att_src2=glorot(ks[4], (h2, c2)),
        att_dst2=glorot(ks[5], (h2, c2)),
        b2=jnp.zeros((c2,), jnp.float32),
    )


def gat_forward(p, x, edge_index, edge_weight, *, out_channels, params):
    # edge_weight is ignored: GATConv built with edge_dim=None ignores edge_attr.
    # Dropout is identity in eval mode.
    del edge_weight
    n = x.shape[0]
    tile_m, tile_k, n_pad = _pick_tiles(n)
    nonedge, counts = build_graph_inputs(edge_index, n_pad, tile_m, tile_k)
    h = params['heads']
    x = gat_conv(x, nonedge, counts, p['w1'], p['att_src1'], p['att_dst1'], p['b1'],
                 heads=h, out_ch=params['hidden_channels1'], concat=True,
                 apply_elu=True, tile_m=tile_m, tile_k=tile_k)
    if params['num_gat_layers'] == 3:
        x = gat_conv(x, nonedge, counts, p['w2'], p['att_src2'], p['att_dst2'], p['b2'],
                     heads=h, out_ch=params['hidden_channels2'], concat=True,
                     apply_elu=True, tile_m=tile_m, tile_k=tile_k)
        wk, sk, dk, bk = 'w3', 'att_src3', 'att_dst3', 'b3'
    else:
        wk, sk, dk, bk = 'w2', 'att_src2', 'att_dst2', 'b2'
    x = gat_conv(x, nonedge, counts, p[wk], p[sk], p[dk], p[bk],
                 heads=out_channels, out_ch=out_channels * 2, concat=False,
                 apply_elu=False, tile_m=tile_m, tile_k=tile_k)
    return x.reshape(n, out_channels, 2)


# pure-JAX dense reference mirroring the kernels' bf16/f32 mixed precision
def _gat_conv_ref(x, edge, w, att_src, att_dst, bias, heads, out_ch, concat,
                  apply_elu):
    xb = x.astype(jnp.bfloat16)
    w3 = w.reshape(-1, heads, out_ch)
    outs = []
    for h in range(heads):
        xp = jnp.dot(xb, w3[:, h, :].astype(jnp.bfloat16),
                     preferred_element_type=jnp.float32)
        xpb = xp.astype(jnp.bfloat16)
        a_s = jnp.dot(xpb, att_src[h].astype(jnp.bfloat16),
                      preferred_element_type=jnp.float32)
        a_d = jnp.dot(xpb, att_dst[h].astype(jnp.bfloat16),
                      preferred_element_type=jnp.float32)
        e = a_d[:, None] + a_s[None, :]
        e = jnp.maximum(e, 0.2 * e)
        e = jnp.where(edge > 0, e, _NEG_INF)
        p = jnp.exp(e - e.max(-1, keepdims=True))
        pb = p.astype(jnp.bfloat16)
        num = jnp.dot(pb, xpb, preferred_element_type=jnp.float32)
        den = pb.astype(jnp.float32).sum(-1, keepdims=True) + 1e-16
        outs.append(num / den)
    out = jnp.concatenate(outs, -1) if concat else sum(outs) / heads
    out = out + bias
    if apply_elu:
        out = jnp.where(out > 0, out, jnp.exp(out) - 1.0)
    return out


if __name__ == "__main__":
    key = jax.random.PRNGKey(0)
    k_x, k_p = jax.random.split(key)

    # small config consistent with the module's __init__
    N = 16
    in_channels = 8
    out_channels = 4
    hp = dict(hidden_channels1=16, heads=2, dropout=0.0, num_gat_layers=2)

    x = jax.random.normal(k_x, (N, in_channels), dtype=jnp.float32)
    src = jnp.concatenate([jnp.arange(N), jnp.arange(N)])
    dst = jnp.concatenate([(jnp.arange(N) + 1) % N, (jnp.arange(N) + 3) % N])
    edge_index = jnp.stack([src, dst]).astype(jnp.int32)           # [2, 32]
    edge_weight = jnp.ones((edge_index.shape[1],), jnp.float32)    # ignored

    params = init_gat_params(k_p, in_channels, out_channels, hp)

    out = gat_forward(params, x, edge_index, edge_weight,
                      out_channels=out_channels, params=hp)
    out = jax.block_until_ready(out)
    assert out.shape == (N, out_channels, 2)

    # sanity check against the pure-JAX dense reference
    edge = jnp.zeros((N, N), jnp.int32).at[edge_index[1], edge_index[0]].set(1)
    edge = jnp.maximum(edge, jnp.eye(N, dtype=jnp.int32))
    r = _gat_conv_ref(x, edge, params['w1'], params['att_src1'],
                      params['att_dst1'], params['b1'],
                      hp['heads'], hp['hidden_channels1'], True, True)
    r = _gat_conv_ref(r, edge, params['w2'], params['att_src2'],
                      params['att_dst2'], params['b2'],
                      out_channels, out_channels * 2, False, False)
    r = r.reshape(N, out_channels, 2)
    err = float(jnp.max(jnp.abs(out - r)))
    assert jnp.allclose(out, r, atol=2e-2, rtol=2e-2), err

    print("KERNEL_OK")
</pallas_src>

<mosaic_0001>
module attributes {stable_mosaic.version = 11 : i64} {
  func.func @_proj_kernel(%arg0: i32, %arg1: memref<128x128xbf16, #tpu.memory_space<vmem>>, %arg2: memref<128x128xbf16, #tpu.memory_space<vmem>>, %arg3: memref<2x128xbf16, #tpu.memory_space<vmem>>, %arg4: memref<128x2xbf16, #tpu.memory_space<vmem>>, %arg5: memref<128x128xbf16, #tpu.memory_space<vmem>>, %arg6: memref<2x128xf32, #tpu.memory_space<vmem>>, %arg7: memref<128x2xf32, #tpu.memory_space<vmem>>) attributes {dimension_semantics = [#tpu.dimension_semantics<parallel>], iteration_bounds = array<i64: 1>, scalar_prefetch = 0 : i64, scratch_operands = 0 : i64, tpu.core_type = #tpu.core_type<tc>, window_params = [{transform_indices = @transform_0, window_bounds = array<i64: 128, 128>}, {pipeline_mode = #tpu.pipeline_mode<synchronous>, transform_indices = @transform_1, window_bounds = array<i64: 128, 128>}, {pipeline_mode = #tpu.pipeline_mode<synchronous>, transform_indices = @transform_2, window_bounds = array<i64: 2, 128>}, {pipeline_mode = #tpu.pipeline_mode<synchronous>, transform_indices = @transform_3, window_bounds = array<i64: 128, 2>}, {transform_indices = @transform_4, window_bounds = array<i64: 128, 128>}, {transform_indices = @transform_5, window_bounds = array<i64: 2, 128>}, {transform_indices = @transform_6, window_bounds = array<i64: 128, 2>}]} {
    %c0 = arith.constant 0 : index
    %c0_0 = arith.constant 0 : index
    %0 = vector.load %arg1[%c0, %c0_0] : memref<128x128xbf16, #tpu.memory_space<vmem>>, vector<128x128xbf16>
    %c0_1 = arith.constant 0 : index
    %c0_2 = arith.constant 0 : index
    %1 = vector.load %arg2[%c0_1, %c0_2] : memref<128x128xbf16, #tpu.memory_space<vmem>>, vector<128x128xbf16>
    %cst = arith.constant dense<0.000000e+00> : vector<128x128xf32>
    %2 = tpu.matmul %0, %1, %cst {dimension_numbers = #tpu.dot_dimension_numbers<[1], [0], [0], [1], [0, 0, 1, 1], [], []>} : vector<128x128xbf16>, vector<128x128xbf16>, vector<128x128xf32> -> vector<128x128xf32>
    %3 = arith.truncf %2 : vector<128x128xf32> to vector<128x128xbf16>
    %c0_3 = arith.constant 0 : index
    %c0_4 = arith.constant 0 : index
    %4 = vector.load %arg5[%c0_3, %c0_4] : memref<128x128xbf16, #tpu.memory_space<vmem>>, vector<128x128xbf16>
    tpu.vector_store %arg5[%c0_3, %c0_4], %3 {strides = array<i32>} : memref<128x128xbf16, #tpu.memory_space<vmem>>, vector<128x128xbf16>,
    %c0_5 = arith.constant 0 : index
    %c0_6 = arith.constant 0 : index
    %5 = vector.load %arg3[%c0_5, %c0_6] : memref<2x128xbf16, #tpu.memory_space<vmem>>, vector<2x128xbf16>
    %cst_7 = arith.constant dense<0.000000e+00> : vector<2x128xf32>
    %6 = tpu.matmul %5, %3, %cst_7 {dimension_numbers = #tpu.dot_dimension_numbers<[1], [1], [0], [0], [0, 0, 1, 0], [], []>} : vector<2x128xbf16>, vector<128x128xbf16>, vector<2x128xf32> -> vector<2x128xf32>
    %c0_8 = arith.constant 0 : index
    %c0_9 = arith.constant 0 : index
    %7 = vector.load %arg6[%c0_8, %c0_9] : memref<2x128xf32, #tpu.memory_space<vmem>>, vector<2x128xf32>
    tpu.vector_store %arg6[%c0_8, %c0_9], %6 {strides = array<i32>} : memref<2x128xf32, #tpu.memory_space<vmem>>, vector<2x128xf32>,
    %c0_10 = arith.constant 0 : index
    %c0_11 = arith.constant 0 : index
    %8 = vector.load %arg4[%c0_10, %c0_11] : memref<128x2xbf16, #tpu.memory_space<vmem>>, vector<128x2xbf16>
    %cst_12 = arith.constant dense<0.000000e+00> : vector<128x2xf32>
    %9 = tpu.matmul %3, %8, %cst_12 {dimension_numbers = #tpu.dot_dimension_numbers<[1], [0], [0], [1], [0, 0, 1, 1], [], []>} : vector<128x128xbf16>, vector<128x2xbf16>, vector<128x2xf32> -> vector<128x2xf32>
    %c0_13 = arith.constant 0 : index
    %c0_14 = arith.constant 0 : index
    %10 = vector.load %arg7[%c0_13, %c0_14] : memref<128x2xf32, #tpu.memory_space<vmem>>, vector<128x2xf32>
    tpu.vector_store %arg7[%c0_13, %c0_14], %9 {strides = array<i32>} : memref<128x2xf32, #tpu.memory_space<vmem>>, vector<128x2xf32>,
    return
  }
  func.func @transform_0(%arg0: i32) -> (i32, i32) {
    %c0_i32 = arith.constant 0 : i32
    %c0_i32_0 = arith.constant 0 : i32
    return %arg0, %c0_i32 : i32, i32
  }
  func.func @transform_1(%arg0: i32) -> (i32, i32) {
    %c0_i32 = arith.constant 0 : i32
    %c0_i32_0 = arith.constant 0 : i32
    %c0_i32_1 = arith.constant 0 : i32
    return %c0_i32, %c0_i32_0 : i32, i32
  }
  func.func @transform_2(%arg0: i32) -> (i32, i32) {
    %c0_i32 = arith.constant 0 : i32
    %c0_i32_0 = arith.constant 0 : i32
    %c0_i32_1 = arith.constant 0 : i32
    return %c0_i32, %c0_i32_0 : i32, i32
  }
  func.func @transform_3(%arg0: i32) -> (i32, i32) {
    %c0_i32 = arith.constant 0 : i32
    %c0_i32_0 = arith.constant 0 : i32
    %c0_i32_1 = arith.constant 0 : i32
    return %c0_i32, %c0_i32_0 : i32, i32
  }
  func.func @transform_4(%arg0: i32) -> (i32, i32) {
    %c0_i32 = arith.constant 0 : i32
    %c0_i32_0 = arith.constant 0 : i32
    return %arg0, %c0_i32 : i32, i32
  }
  func.func @transform_5(%arg0: i32) -> (i32, i32) {
    %c0_i32 = arith.constant 0 : i32
    %c0_i32_0 = arith.constant 0 : i32
    return %c0_i32, %arg0 : i32, i32
  }
  func.func @transform_6(%arg0: i32) -> (i32, i32) {
    %c0_i32 = arith.constant 0 : i32
    %c0_i32_0 = arith.constant 0 : i32
    return %arg0, %c0_i32 : i32, i32
  }
}

</mosaic_0001>

<llo_original>
// kernel: tpu_custom_call.1
$region0: #{tpu_custom_call.1}
  #allocation0 [shape = 'u32[]', space=smem, size = 0x4, offset = 0x4, fixed_abs, tag = 'smem constant byte address 0x4 - core index']
  #allocation1 [shape = 'u32[144,128]{1,0:T(1,128)}', space=vmem, size = 0x12000, scoped, tag = 'internal scratch']
  %s0 = inlined_call_operand.vmem [shape: bf16[128,128], index: 0, kind: input, shape index: {}]
  %s1 = inlined_call_operand.hbm [shape: bf16[128,128], index: 1, kind: input, shape index: {}]
  %s2 = inlined_call_operand.vmem [shape: bf16[2,128], index: 2, kind: input, shape index: {}]
  %s3 = inlined_call_operand.vmem [shape: bf16[128,2], index: 3, kind: input, shape index: {}]
  %s4 = inlined_call_operand.hbm [shape: bf16[128,128], index: 4, kind: output, shape index: {0}]
  %s5 = inlined_call_operand.hbm [shape: f32[2,128], index: 5, kind: output, shape index: {1}]
  %s6 = inlined_call_operand.vmem [shape: f32[128,2], index: 6, kind: output, shape index: {2}]
  %7 = xla_tuple %s4, %s5, %s6
  %s8 = sld [smem:[#allocation0]]
  $region46: #{tpu_custom_call.1} parent=0
    _
  %s10 = ssub.s32 1, %s8
  %s11 = scalar_select 0, %s10, %s8
  $region1: #{tpu_custom_call.1} parent=0
    #allocation2 [shape = 'u8[32768]{0}', space=vmem, size = 0x8000, scoped, tag = 'input window, operand 1, single buffered']
    #allocation3 [shape = 's32[1]{0}', space=sflag, size = 0x4, scoped, tag = 'scoped memory for tpu_custom_call.1']
    #allocation4 [shape = 's32[1]{0}', space=sflag, size = 0x4, scoped, tag = 'scoped memory for tpu_custom_call.1']
    #allocation5 [shape = 'u8[32768]{0}', space=vmem, size = 0x8000, scoped, tag = 'output window, operand 0, single buffered']
    #allocation6 [shape = 'u8[1024]{0}', space=vmem, size = 0x400, scoped, tag = 'output window, operand 1, single buffered']
    #allocation7 [shape = 's32[1]{0}', space=sflag, size = 0x4, scoped, tag = 'scoped memory for tpu_custom_call.1']
    %12 = vsyncpa [#allocation3], 0
    %13 = vsyncpa [#allocation4], 0
    %14 = vsyncpa [#allocation7], 0
    // Predicated region
    $region2: #{tpu_custom_call.1} parent=1 // pred_check
      _
    $region3: #{tpu_custom_call.1} parent=1 // pred_check_branch
      %16 = sbr.rel (0) target = $region5
    $region4: #{tpu_custom_call.1} parent=1 // pred_region
      _
    $region5: #{tpu_custom_call.1} parent=1 // pred_fallthru
      _
    // Predicated region
    $region6: #{tpu_custom_call.1} parent=1 // pred_check
      _
    $region7: #{tpu_custom_call.1} parent=1 // pred_check_branch
      %18 = sbr.rel (0) target = $region9
    $region8: #{tpu_custom_call.1} parent=1 // pred_region
      %s20 = ssub.s32 1024, 1024
      %21 = vsyncadd [#allocation3], %s20
      %s22 = sshll.u32 [#allocation2], 4
      %s23 = int_to_ptr.vmem [resolvable:$true] %s22
      %28 = dma.hbm_to_vmem [thread:$0]  %s1, 1024, %s23, [#allocation3], 64, 64, 4
    $region9: #{tpu_custom_call.1} parent=1 // pred_fallthru
      _
    // Predicated region
    $region10: #{tpu_custom_call.1} parent=1 // pred_check
      _
    $region11: #{tpu_custom_call.1} parent=1 // pred_check_branch
      %30 = sbr.rel (0) target = $region13
    $region12: #{tpu_custom_call.1} parent=1 // pred_region
      _
    $region13: #{tpu_custom_call.1} parent=1 // pred_fallthru
      _
    // Predicated region
    $region14: #{tpu_custom_call.1} parent=1 // pred_check
      _
    $region15: #{tpu_custom_call.1} parent=1 // pred_check_branch
      %32 = sbr.rel (0) target = $region17
    $region16: #{tpu_custom_call.1} parent=1 // pred_region
      _
    $region17: #{tpu_custom_call.1} parent=1 // pred_fallthru
      _
    // Predicated region
    $region18: #{tpu_custom_call.1} parent=1 // pred_check
      _
    $region19: #{tpu_custom_call.1} parent=1 // pred_check_branch
      %34 = sbr.rel (0) target = $region21
    $region20: #{tpu_custom_call.1} parent=1 // pred_region
      %35 = dma.done [#allocation3], 1024
    $region21: #{tpu_custom_call.1} parent=1 // pred_fallthru
      _
    %v37 = vld [vmem:[%s0] sm:$0xf]
    %v38 = vld [vmem:[%s0 + $0x4] sm:$0xf]
    %v39 = vld [vmem:[%s0 + $0x8] sm:$0xf]
    %v40 = vld [vmem:[%s0 + $0xc] sm:$0xf]
    %v41 = vld [vmem:[%s0 + $0x10] sm:$0xf]
    %v42 = vld [vmem:[%s0 + $0x14] sm:$0xf]
    %v43 = vld [vmem:[%s0 + $0x18] sm:$0xf]
    %v44 = vld [vmem:[%s0 + $0x1c] sm:$0xf]
    %v45 = vld [vmem:[%s0 + $0x20] sm:$0xf]
    %v46 = vld [vmem:[%s0 + $0x24] sm:$0xf]
    %v47 = vld [vmem:[%s0 + $0x28] sm:$0xf]
    %v48 = vld [vmem:[%s0 + $0x2c] sm:$0xf]
    %v49 = vld [vmem:[%s0 + $0x30] sm:$0xf]
    %v50 = vld [vmem:[%s0 + $0x34] sm:$0xf]
    %v51 = vld [vmem:[%s0 + $0x38] sm:$0xf]
    %v52 = vld [vmem:[%s0 + $0x3c] sm:$0xf]
    %v53 = vld [vmem:[#allocation2] sm:$0xf]
    %v54 = vld [vmem:[#allocation2 + $0x4] sm:$0xf]
    %v55 = vld [vmem:[#allocation2 + $0x8] sm:$0xf]
    %v56 = vld [vmem:[#allocation2 + $0xc] sm:$0xf]
    %v57 = vld [vmem:[#allocation2 + $0x10] sm:$0xf]
    %v58 = vld [vmem:[#allocation2 + $0x14] sm:$0xf]
    %v59 = vld [vmem:[#allocation2 + $0x18] sm:$0xf]
    %v60 = vld [vmem:[#allocation2 + $0x1c] sm:$0xf]
    %v61 = vld [vmem:[#allocation2 + $0x20] sm:$0xf]
    %v62 = vld [vmem:[#allocation2 + $0x24] sm:$0xf]
    %v63 = vld [vmem:[#allocation2 + $0x28] sm:$0xf]
    %v64 = vld [vmem:[#allocation2 + $0x2c] sm:$0xf]
    %v65 = vld [vmem:[#allocation2 + $0x30] sm:$0xf]
    %v66 = vld [vmem:[#allocation2 + $0x34] sm:$0xf]
    %v67 = vld [vmem:[#allocation2 + $0x38] sm:$0xf]
    %v68 = vld [vmem:[#allocation2 + $0x3c] sm:$0xf]
    %v85 = vunpack.c.l.b16 %v37
    %v86 = vunpack.c.l.b16 %v38
    %v87 = vunpack.c.l.b16 %v39
    %v88 = vunpack.c.l.b16 %v40
    %v89 = vunpack.c.l.b16 %v41
    %v90 = vunpack.c.l.b16 %v42
    %v91 = vunpack.c.l.b16 %v43
    %v92 = vunpack.c.l.b16 %v44
    %v93 = vunpack.c.l.b16 %v45
    %v94 = vunpack.c.l.b16 %v46
    %v95 = vunpack.c.l.b16 %v47
    %v96 = vunpack.c.l.b16 %v48
    %v97 = vunpack.c.l.b16 %v49
    %v98 = vunpack.c.l.b16 %v50
    %v99 = vunpack.c.l.b16 %v51
    %v100 = vunpack.c.l.b16 %v52
    %v101 = vpack.c.b16 %v86, %v85
    %v102 = vpack.c.b16 %v88, %v87
    %v103 = vpack.c.b16 %v90, %v89
    %v104 = vpack.c.b16 %v92, %v91
    %v105 = vpack.c.b16 %v94, %v93
    %v106 = vpack.c.b16 %v96, %v95
    %v107 = vpack.c.b16 %v98, %v97
    %v108 = vpack.c.b16 %v100, %v99
    %v133 = vunpack.c.l.b16 %v53
    %v134 = vunpack.c.l.b16 %v54
    %v135 = vunpack.c.l.b16 %v55
    %v136 = vunpack.c.l.b16 %v56
    %v137 = vunpack.c.l.b16 %v57
    %v138 = vunpack.c.l.b16 %v58
    %v139 = vunpack.c.l.b16 %v59
    %v140 = vunpack.c.l.b16 %v60
    %v141 = vunpack.c.l.b16 %v61
    %v142 = vunpack.c.l.b16 %v62
    %v143 = vunpack.c.l.b16 %v63
    %v144 = vunpack.c.l.b16 %v64
    %v145 = vunpack.c.l.b16 %v65
    %v146 = vunpack.c.l.b16 %v66
    %v147 = vunpack.c.l.b16 %v67
    %v148 = vunpack.c.l.b16 %v68
    %v149 = vpack.c.b16 %v134, %v133
    %v150 = vpack.c.b16 %v136, %v135
    %v151 = vpack.c.b16 %v138, %v137
    %v152 = vpack.c.b16 %v140, %v139
    %v153 = vpack.c.b16 %v142, %v141
    %v154 = vpack.c.b16 %v144, %v143
    %v155 = vpack.c.b16 %v146, %v145
    %v156 = vpack.c.b16 %v148, %v147
    %165 = vmatprep.subr.bf16.mxu0 0
    %166 = vmatpush1.bf16.msra.mxu0 %v149
    %167 = vmatprep.subr.bf16.mxu0 0
    %168 = vmatpush1.bf16.msra.mxu0 %v150
    %169 = vmatprep.subr.bf16.mxu0 0
    %170 = vmatpush1.bf16.msra.mxu0 %v151
    %171 = vmatprep.subr.bf16.mxu0 0
    %172 = vmatpush1.bf16.msra.mxu0 %v152
    %173 = vmatprep.subr.bf16.mxu0 0
    %174 = vmatpush1.bf16.msra.mxu0 %v153
    %175 = vmatprep.subr.bf16.mxu0 0
    %176 = vmatpush1.bf16.msra.mxu0 %v154
    %177 = vmatprep.subr.bf16.mxu0 0
    %178 = vmatpush1.bf16.msra.mxu0 %v155
    %179 = vmatprep.subr.bf16.mxu0 0
    %180 = vmatpush1.bf16.msra.mxu0 %v156
    %181 = vmatprep.subr.bf16.mxu0 0
    %182 = vmatpush1.bf16.msra.mxu0 0
    %183 = vmatprep.subr.bf16.mxu0 0
    %184 = vmatpush1.bf16.msra.mxu0 0
    %185 = vmatprep.subr.bf16.mxu0 0
    %186 = vmatpush1.bf16.msra.mxu0 0
    %187 = vmatprep.subr.bf16.mxu0 0
    %188 = vmatpush1.bf16.msra.mxu0 0
    %189 = vmatprep.subr.bf16.mxu0 0
    %190 = vmatpush1.bf16.msra.mxu0 0
    %191 = vmatprep.subr.bf16.mxu0 0
    %192 = vmatpush1.bf16.msra.mxu0 0
    %193 = vmatprep.subr.bf16.mxu0 0
    %194 = vmatpush1.bf16.msra.mxu0 0
    %195 = vmatprep.subr.bf16.mxu0 0
    %196 = vmatpush1.bf16.msra.mxu0 0
    %197 = vmatprep.mubr.bf16.mxu0 0
    %198 = vmatmul.mubr.bf16.gmra.mrb[0].mxu0 %v101
    %v199 = vpop.f32.mrb[0].mxu0
    %v200 = vadd.f32 0.0, %v199
    %v201 = vpop.f32.mrb[0].mxu0
    %v202 = vpop.f32.mrb[0].mxu0
    %v203 = vadd.f32 0.0, %v202
    %v204 = vpop.f32.mrb[0].mxu0
    %205 = vmatprep.mubr.bf16.mxu0 0
    %206 = vmatmul.mubr.bf16.gmra.mrb[0].mxu0 %v102
    %v207 = vpop.f32.mrb[0].mxu0
    %v208 = vadd.f32 0.0, %v207
    %v209 = vpop.f32.mrb[0].mxu0
    %v210 = vpop.f32.mrb[0].mxu0
    %v211 = vadd.f32 0.0, %v210
    %v212 = vpop.f32.mrb[0].mxu0
    %213 = vmatprep.mubr.bf16.mxu0 0
    %214 = vmatmul.mubr.bf16.gmra.mrb[0].mxu0 %v103
    %v215 = vpop.f32.mrb[0].mxu0
    %v216 = vadd.f32 0.0, %v215
    %v217 = vpop.f32.mrb[0].mxu0
    %v218 = vpop.f32.mrb[0].mxu0
    %v219 = vadd.f32 0.0, %v218
    %v220 = vpop.f32.mrb[0].mxu0
    %221 = vmatprep.mubr.bf16.mxu0 0
    %222 = vmatmul.mubr.bf16.gmra.mrb[0].mxu0 %v104
    %v223 = vpop.f32.mrb[0].mxu0
    %v224 = vadd.f32 0.0, %v223
    %v225 = vpop.f32.mrb[0].mxu0
    %v226 = vpop.f32.mrb[0].mxu0
    %v227 = vadd.f32 0.0, %v226
    %v228 = vpop.f32.mrb[0].mxu0
    %229 = vmatprep.mubr.bf16.mxu0 0
    %230 = vmatmul.mubr.bf16.gmra.mrb[0].mxu0 %v105
    %v231 = vpop.f32.mrb[0].mxu0
    %v232 = vadd.f32 0.0, %v231
    %v233 = vpop.f32.mrb[0].mxu0
    %v234 = vpop.f32.mrb[0].mxu0
    %v235 = vadd.f32 0.0, %v234
    %v236 = vpop.f32.mrb[0].mxu0
    %237 = vmatprep.mubr.bf16.mxu0 0
    %238 = vmatmul.mubr.bf16.gmra.mrb[0].mxu0 %v106
    %v239 = vpop.f32.mrb[0].mxu0
    %v240 = vadd.f32 0.0, %v239
    %v241 = vpop.f32.mrb[0].mxu0
    %v242 = vpop.f32.mrb[0].mxu0
    %v243 = vadd.f32 0.0, %v242
    %v244 = vpop.f32.mrb[0].mxu0
    %245 = vmatprep.mubr.bf16.mxu0 0
    %246 = vmatmul.mubr.bf16.gmra.mrb[0].mxu0 %v107
    %v247 = vpop.f32.mrb[0].mxu0
    %v248 = vadd.f32 0.0, %v247
    %v249 = vpop.f32.mrb[0].mxu0
    %v250 = vpop.f32.mrb[0].mxu0
    %v251 = vadd.f32 0.0, %v250
    %v252 = vpop.f32.mrb[0].mxu0
    %253 = vmatprep.mubr.bf16.mxu0 0
    %254 = vmatmul.mubr.bf16.gmra.mrb[0].mxu0 %v108
    %v255 = vpop.f32.mrb[0].mxu0
    %v256 = vadd.f32 0.0, %v255
    %v257 = vpop.f32.mrb[0].mxu0
    %v258 = vpop.f32.mrb[0].mxu0
    %v259 = vadd.f32 0.0, %v258
    %v260 = vpop.f32.mrb[0].mxu0
    %261 = vdwg.mxu0
    %v262 = vpack.c.bf16 %v203, %v200
    %v263 = vpack.c.bf16 %v211, %v208
    %v264 = vpack.c.bf16 %v219, %v216
    %v265 = vpack.c.bf16 %v227, %v224
    %v266 = vpack.c.bf16 %v235, %v232
    %v267 = vpack.c.bf16 %v243, %v240
    %v268 = vpack.c.bf16 %v251, %v248
    %v269 = vpack.c.bf16 %v259, %v256
    %v278 = vunpack.c.l.b16 %v262
    %v279 = vunpack.c.h.b16 %v262
    %v280 = vunpack.c.l.b16 %v263
    %v281 = vunpack.c.h.b16 %v263
    %v282 = vunpack.c.l.b16 %v264
    %v283 = vunpack.c.h.b16 %v264
    %v284 = vunpack.c.l.b16 %v265
    %v285 = vunpack.c.h.b16 %v265
    %v286 = vunpack.c.l.b16 %v266
    %v287 = vunpack.c.h.b16 %v266
    %v288 = vunpack.c.l.b16 %v267
    %v289 = vunpack.c.h.b16 %v267
    %v290 = vunpack.c.l.b16 %v268
    %v291 = vunpack.c.h.b16 %v268
    %v292 = vunpack.c.l.b16 %v269
    %v293 = vunpack.c.h.b16 %v269
    %v294 = vpack.c.b16 %v278, %v278
    %v295 = vpack.c.b16 %v279, %v279
    %v296 = vpack.c.b16 %v280, %v280
    %v297 = vpack.c.b16 %v281, %v281
    %v298 = vpack.c.b16 %v282, %v282
    %v299 = vpack.c.b16 %v283, %v283
    %v300 = vpack.c.b16 %v284, %v284
    %v301 = vpack.c.b16 %v285, %v285
    %v302 = vpack.c.b16 %v286, %v286
    %v303 = vpack.c.b16 %v287, %v287
    %v304 = vpack.c.b16 %v288, %v288
    %v305 = vpack.c.b16 %v289, %v289
    %v306 = vpack.c.b16 %v290, %v290
    %v307 = vpack.c.b16 %v291, %v291
    %v308 = vpack.c.b16 %v292, %v292
    %v309 = vpack.c.b16 %v293, %v293
    %326 = vst [vmem:[#allocation5] sm:$0xf] %v294
    %327 = vst [vmem:[#allocation5 + $0x4] sm:$0xf] %v295
    %328 = vst [vmem:[#allocation5 + $0x8] sm:$0xf] %v296
    %329 = vst [vmem:[#allocation5 + $0xc] sm:$0xf] %v297
    %330 = vst [vmem:[#allocation5 + $0x10] sm:$0xf] %v298
    %331 = vst [vmem:[#allocation5 + $0x14] sm:$0xf] %v299
    %332 = vst [vmem:[#allocation5 + $0x18] sm:$0xf] %v300
    %333 = vst [vmem:[#allocation5 + $0x1c] sm:$0xf] %v301
    %334 = vst [vmem:[#allocation5 + $0x20] sm:$0xf] %v302
    %335 = vst [vmem:[#allocation5 + $0x24] sm:$0xf] %v303
    %336 = vst [vmem:[#allocation5 + $0x28] sm:$0xf] %v304
    %337 = vst [vmem:[#allocation5 + $0x2c] sm:$0xf] %v305
    %338 = vst [vmem:[#allocation5 + $0x30] sm:$0xf] %v306
    %339 = vst [vmem:[#allocation5 + $0x34] sm:$0xf] %v307
    %340 = vst [vmem:[#allocation5 + $0x38] sm:$0xf] %v308
    %341 = vst [vmem:[#allocation5 + $0x3c] sm:$0xf] %v309
    %v342 = vld [vmem:[%s2] sm:$0x1]
    %343 = vmatprep.subr.bf16.mxu0 0
    %344 = vmatpush1.bf16.xpose.msra.mxu0 %v262
    %345 = vmatprep.subr.bf16.mxu0 0
    %346 = vmatpush1.bf16.xpose.msra.mxu0 %v263
    %347 = vmatprep.subr.bf16.mxu0 0
    %348 = vmatpush1.bf16.xpose.msra.mxu0 %v264
    %349 = vmatprep.subr.bf16.mxu0 0
    %350 = vmatpush1.bf16.xpose.msra.mxu0 %v265
    %351 = vmatprep.subr.bf16.mxu0 0
    %352 = vmatpush1.bf16.xpose.msra.mxu0 %v266
    %353 = vmatprep.subr.bf16.mxu0 0
    %354 = vmatpush1.bf16.xpose.msra.mxu0 %v267
    %355 = vmatprep.subr.bf16.mxu0 0
    %356 = vmatpush1.bf16.xpose.msra.mxu0 %v268
    %357 = vmatprep.subr.bf16.mxu0 0
    %358 = vmatpush1.bf16.xpose.msra.mxu0 %v269
    %359 = vmatprep.subr.bf16.mxu0 0
    %360 = vmatpush1.bf16.xpose.msra.mxu0 0
    %361 = vmatprep.subr.bf16.mxu0 0
    %362 = vmatpush1.bf16.xpose.msra.mxu0 0
    %363 = vmatprep.subr.bf16.mxu0 0
    %364 = vmatpush1.bf16.xpose.msra.mxu0 0
    %365 = vmatprep.subr.bf16.mxu0 0
    %366 = vmatpush1.bf16.xpose.msra.mxu0 0
    %367 = vmatprep.subr.bf16.mxu0 0
    %368 = vmatpush1.bf16.xpose.msra.mxu0 0
    %369 = vmatprep.subr.bf16.mxu0 0
    %370 = vmatpush1.bf16.xpose.msra.mxu0 0
    %371 = vmatprep.subr.bf16.mxu0 0
    %372 = vmatpush1.bf16.xpose.msra.mxu0 0
    %373 = vmatprep.subr.bf16.mxu0 0
    %374 = vmatpush1.bf16.xpose.msra.mxu0 0
    %375 = vmatprep.mubr.bf16.mxu0 0
    %376 = vmatmul.mubr.bf16.gmra.mrb[0].mxu0 %v342
    %v377 = vpop.f32.mrb[0].mxu0
    %v378 = vadd.f32 0.0, %v377
    %v379 = vpop.f32.mrb[0].mxu0
    %v380 = vpop.f32.mrb[0].mxu0
    %v381 = vpop.f32.mrb[0].mxu0
    %382 = vdwg.mxu0
    %383 = vst [vmem:[#allocation6] sm:$0x3] %v378
    %v384 = vld [vmem:[%s3] sm:$0xf]
    %v385 = vld [vmem:[%s3 + $0x4] sm:$0xf]
    %v386 = vld [vmem:[%s3 + $0x8] sm:$0xf]
    %v387 = vld [vmem:[%s3 + $0xc] sm:$0xf]
    %v388 = vld [vmem:[%s3 + $0x10] sm:$0xf]
    %v389 = vld [vmem:[%s3 + $0x14] sm:$0xf]
    %v390 = vld [vmem:[%s3 + $0x18] sm:$0xf]
    %v391 = vld [vmem:[%s3 + $0x1c] sm:$0xf]
    %v392 = vld [vmem:[%s3 + $0x20] sm:$0xf]
    %v393 = vld [vmem:[%s3 + $0x24] sm:$0xf]
    %v394 = vld [vmem:[%s3 + $0x28] sm:$0xf]
    %v395 = vld [vmem:[%s3 + $0x2c] sm:$0xf]
    %v396 = vld [vmem:[%s3 + $0x30] sm:$0xf]
    %v397 = vld [vmem:[%s3 + $0x34] sm:$0xf]
    %v398 = vld [vmem:[%s3 + $0x38] sm:$0xf]
    %v399 = vld [vmem:[%s3 + $0x3c] sm:$0xf]
    %v416 = vunpack.c.l.b16 %v384
    %v417 = vunpack.c.l.b16 %v385
    %v418 = vunpack.c.l.b16 %v386
    %v419 = vunpack.c.l.b16 %v387
    %v420 = vunpack.c.l.b16 %v388
    %v421 = vunpack.c.l.b16 %v389
    %v422 = vunpack.c.l.b16 %v390
    %v423 = vunpack.c.l.b16 %v391
    %v424 = vunpack.c.l.b16 %v392
    %v425 = vunpack.c.l.b16 %v393
    %v426 = vunpack.c.l.b16 %v394
    %v427 = vunpack.c.l.b16 %v395
    %v428 = vunpack.c.l.b16 %v396
    %v429 = vunpack.c.l.b16 %v397
    %v430 = vunpack.c.l.b16 %v398
    %v431 = vunpack.c.l.b16 %v399
    %v432 = vpack.c.b16 %v417, %v416
    %v433 = vpack.c.b16 %v419, %v418
    %v434 = vpack.c.b16 %v421, %v420
    %v435 = vpack.c.b16 %v423, %v422
    %v436 = vpack.c.b16 %v425, %v424
    %v437 = vpack.c.b16 %v427, %v426
    %v438 = vpack.c.b16 %v429, %v428
    %v439 = vpack.c.b16 %v431, %v430
    %448 = vmatprep.subr.bf16.mxu0 0
    %449 = vmatpush1.bf16.msra.mxu0 %v432
    %450 = vmatprep.subr.bf16.mxu0 0
    %451 = vmatpush1.bf16.msra.mxu0 %v433
    %452 = vmatprep.subr.bf16.mxu0 0
    %453 = vmatpush1.bf16.msra.mxu0 %v434
    %454 = vmatprep.subr.bf16.mxu0 0
    %455 = vmatpush1.bf16.msra.mxu0 %v435
    %456 = vmatprep.subr.bf16.mxu0 0
    %457 = vmatpush1.bf16.msra.mxu0 %v436
    %458 = vmatprep.subr.bf16.mxu0 0
    %459 = vmatpush1.bf16.msra.mxu0 %v437
    %460 = vmatprep.subr.bf16.mxu0 0
    %461 = vmatpush1.bf16.msra.mxu0 %v438
    %462 = vmatprep.subr.bf16.mxu0 0
    %463 = vmatpush1.bf16.msra.mxu0 %v439
    %464 = vmatprep.subr.bf16.mxu0 0
    %465 = vmatpush1.bf16.msra.mxu0 0
    %466 = vmatprep.subr.bf16.mxu0 0
    %467 = vmatpush1.bf16.msra.mxu0 0
    %468 = vmatprep.subr.bf16.mxu0 0
    %469 = vmatpush1.bf16.msra.mxu0 0
    %470 = vmatprep.subr.bf16.mxu0 0
    %471 = vmatpush1.bf16.msra.mxu0 0
    %472 = vmatprep.subr.bf16.mxu0 0
    %473 = vmatpush1.bf16.msra.mxu0 0
    %474 = vmatprep.subr.bf16.mxu0 0
    %475 = vmatpush1.bf16.msra.mxu0 0
    %476 = vmatprep.subr.bf16.mxu0 0
    %477 = vmatpush1.bf16.msra.mxu0 0
    %478 = vmatprep.subr.bf16.mxu0 0
    %479 = vmatpush1.bf16.msra.mxu0 0
    %480 = vmatprep.mubr.bf16.mxu0 0
    %481 = vmatmul.mubr.bf16.gmra.mrb[0].mxu0 %v262
    %v482 = vpop.f32.mrb[0].mxu0
    %v483 = vadd.f32 0.0, %v482
    %v484 = vpop.f32.mrb[0].mxu0
    %v485 = vpop.f32.mrb[0].mxu0
    %v486 = vadd.f32 0.0, %v485
    %v487 = vpop.f32.mrb[0].mxu0
    %488 = vmatprep.mubr.bf16.mxu0 0
    %489 = vmatmul.mubr.bf16.gmra.mrb[0].mxu0 %v263
    %v490 = vpop.f32.mrb[0].mxu0
    %v491 = vadd.f32 0.0, %v490
    %v492 = vpop.f32.mrb[0].mxu0
    %v493 = vpop.f32.mrb[0].mxu0
    %v494 = vadd.f32 0.0, %v493
    %v495 = vpop.f32.mrb[0].mxu0
    %496 = vmatprep.mubr.bf16.mxu0 0
    %497 = vmatmul.mubr.bf16.gmra.mrb[0].mxu0 %v264
    %v498 = vpop.f32.mrb[0].mxu0
    %v499 = vadd.f32 0.0, %v498
    %v500 = vpop.f32.mrb[0].mxu0
    %v501 = vpop.f32.mrb[0].mxu0
    %v502 = vadd.f32 0.0, %v501
    %v503 = vpop.f32.mrb[0].mxu0
    %504 = vmatprep.mubr.bf16.mxu0 0
    %505 = vmatmul.mubr.bf16.gmra.mrb[0].mxu0 %v265
    %v506 = vpop.f32.mrb[0].mxu0
    %v507 = vadd.f32 0.0, %v506
    %v508 = vpop.f32.mrb[0].mxu0
    %v509 = vpop.f32.mrb[0].mxu0
    %v510 = vadd.f32 0.0, %v509
    %v511 = vpop.f32.mrb[0].mxu0
    %512 = vmatprep.mubr.bf16.mxu0 0
    %513 = vmatmul.mubr.bf16.gmra.mrb[0].mxu0 %v266
    %v514 = vpop.f32.mrb[0].mxu0
    %v515 = vadd.f32 0.0, %v514
    %v516 = vpop.f32.mrb[0].mxu0
    %v517 = vpop.f32.mrb[0].mxu0
    %v518 = vadd.f32 0.0, %v517
    %v519 = vpop.f32.mrb[0].mxu0
    %520 = vmatprep.mubr.bf16.mxu0 0
    %521 = vmatmul.mubr.bf16.gmra.mrb[0].mxu0 %v267
    %v522 = vpop.f32.mrb[0].mxu0
    %v523 = vadd.f32 0.0, %v522
    %v524 = vpop.f32.mrb[0].mxu0
    %v525 = vpop.f32.mrb[0].mxu0
    %v526 = vadd.f32 0.0, %v525
    %v527 = vpop.f32.mrb[0].mxu0
    %528 = vmatprep.mubr.bf16.mxu0 0
    %529 = vmatmul.mubr.bf16.gmra.mrb[0].mxu0 %v268
    %v530 = vpop.f32.mrb[0].mxu0
    %v531 = vadd.f32 0.0, %v530
    %v532 = vpop.f32.mrb[0].mxu0
    %v533 = vpop.f32.mrb[0].mxu0
    %v534 = vadd.f32 0.0, %v533
    %v535 = vpop.f32.mrb[0].mxu0
    %536 = vmatprep.mubr.bf16.mxu0 0
    %537 = vmatmul.mubr.bf16.gmra.mrb[0].mxu0 %v269
    %v538 = vpop.f32.mrb[0].mxu0
    %v539 = vadd.f32 0.0, %v538
    %v540 = vpop.f32.mrb[0].mxu0
    %v541 = vpop.f32.mrb[0].mxu0
    %v542 = vadd.f32 0.0, %v541
    %v543 = vpop.f32.mrb[0].mxu0
    %544 = vdwg.mxu0
    %vm545 = vcmask 15360
    %546 = vst.msk [vmem:[%s6] sm:$0xff] %vm545, %v483
    %547 = vst.msk [vmem:[%s6 + $0x8] sm:$0xff] %vm545, %v486
    %548 = vst.msk [vmem:[%s6 + $0x10] sm:$0xff] %vm545, %v491
    %549 = vst.msk [vmem:[%s6 + $0x18] sm:$0xff] %vm545, %v494
    %550 = vst.msk [vmem:[%s6 + $0x20] sm:$0xff] %vm545, %v499
    %551 = vst.msk [vmem:[%s6 + $0x28] sm:$0xff] %vm545, %v502
    %552 = vst.msk [vmem:[%s6 + $0x30] sm:$0xff] %vm545, %v507
    %553 = vst.msk [vmem:[%s6 + $0x38] sm:$0xff] %vm545, %v510
    %554 = vst.msk [vmem:[%s6 + $0x40] sm:$0xff] %vm545, %v515
    %555 = vst.msk [vmem:[%s6 + $0x48] sm:$0xff] %vm545, %v518
    %556 = vst.msk [vmem:[%s6 + $0x50] sm:$0xff] %vm545, %v523
    %557 = vst.msk [vmem:[%s6 + $0x58] sm:$0xff] %vm545, %v526
    %558 = vst.msk [vmem:[%s6 + $0x60] sm:$0xff] %vm545, %v531
    %559 = vst.msk [vmem:[%s6 + $0x68] sm:$0xff] %vm545, %v534
    %560 = vst.msk [vmem:[%s6 + $0x70] sm:$0xff] %vm545, %v539
    %561 = vst.msk [vmem:[%s6 + $0x78] sm:$0xff] %vm545, %v542
    // Predicated region
    $region22: #{tpu_custom_call.1} parent=1 // pred_check
      _
    $region23: #{tpu_custom_call.1} parent=1 // pred_check_branch
      %563 = sbr.rel (0) target = $region25
    $region24: #{tpu_custom_call.1} parent=1 // pred_region
      %s565 = ssub.s32 1024, 1024
      %566 = vsyncadd [#allocation4], %s565
      %s567 = sshll.u32 [#allocation5], 4
      %s568 = int_to_ptr.vmem [resolvable:$true] %s567
      %573 = dma.vmem_to_hbm [thread:$0]  %s568, 1024, %s4, [#allocation4], 64, 64, 4
    $region25: #{tpu_custom_call.1} parent=1 // pred_fallthru
      _
    // Predicated region
    $region26: #{tpu_custom_call.1} parent=1 // pred_check
      _
    $region27: #{tpu_custom_call.1} parent=1 // pred_check_branch
      %575 = sbr.rel (0) target = $region29
    $region28: #{tpu_custom_call.1} parent=1 // pred_region
      %s577 = ssub.s32 32, 32
      %578 = vsyncadd [#allocation7], %s577
      %s580 = sshll.u32 [#allocation6], 4
      %s581 = int_to_ptr.vmem [resolvable:$true] %s580
      %583 = dma.vmem_to_hbm [thread:$0]  %s581, 32, %s5, [#allocation7]
    $region29: #{tpu_custom_call.1} parent=1 // pred_fallthru
      _
    // Predicated region
    $region30: #{tpu_custom_call.1} parent=1 // pred_check
      _
    $region31: #{tpu_custom_call.1} parent=1 // pred_check_branch
      %585 = sbr.rel (0) target = $region33
    $region32: #{tpu_custom_call.1} parent=1 // pred_region
      _
    $region33: #{tpu_custom_call.1} parent=1 // pred_fallthru
      _
    // Predicated region
    $region34: #{tpu_custom_call.1} parent=1 // pred_check
      _
    $region35: #{tpu_custom_call.1} parent=1 // pred_check_branch
      %587 = sbr.rel (0) target = $region37
    $region36: #{tpu_custom_call.1} parent=1 // pred_region
      %588 = dma.done [#allocation4], 1024
    $region37: #{tpu_custom_call.1} parent=1 // pred_fallthru
      _
    // Predicated region
    $region38: #{tpu_custom_call.1} parent=1 // pred_check
      _
    $region39: #{tpu_custom_call.1} parent=1 // pred_check_branch
      %590 = sbr.rel (0) target = $region41
    $region40: #{tpu_custom_call.1} parent=1 // pred_region
      %591 = dma.done [#allocation7], 32
    $region41: #{tpu_custom_call.1} parent=1 // pred_fallthru
      _
    // Predicated region
    $region42: #{tpu_custom_call.1} parent=1 // pred_check
      _
    $region43: #{tpu_custom_call.1} parent=1 // pred_check_branch
      %593 = sbr.rel (0) target = $region45
    $region44: #{tpu_custom_call.1} parent=1 // pred_region
      _
    $region45: #{tpu_custom_call.1} parent=1 // pred_fallthru
      _
    %594 = vsyncpa [#allocation3], 1
    %595 = vsyncpa [#allocation4], 1
    %596 = vsyncpa [#allocation7], 1

</llo_original>
